<compile_context>
chip_gen: v6e
topology: v6e:2x2x1
jax: 0.10.0
libtpu: 0.0.40
codegen_flags: <defaults>
</compile_context>

<pallas_src>
import jax
import jax.numpy as jnp
from jax.experimental import pallas as pl
from jax.experimental.pallas import tpu as pltpu


def _round_up(x, m):
    return (x + m - 1) // m * m


def critic_kernel(x_ref, w1_ref, b1_ref, w2_ref, b2_ref, out_ref):
    # Hidden layer on the MXU: (TM, S) @ (S, Hp) -> (TM, Hp), fp32 accumulate.
    h = jnp.dot(x_ref[...], w1_ref[...], preferred_element_type=jnp.float32)
    h = jnp.maximum(h + b1_ref[...], 0.0)          # bias + ReLU on the VPU
    # Value head (single output unit): VPU multiply + XLU lane reduce instead of
    # an N=1 MXU matmul (which would use 1/128..1/256 of MXU output width and
    # still pay a full result-FIFO drain).
    v = jnp.sum(h * w2_ref[...], axis=-1)          # (TM,)
    v = v + b2_ref[0]                              # scalar bias from SMEM
    # Lane-dense store: batch lives on the lane (last) axis of the output tile.
    out_ref[...] = v[None, :].astype(out_ref.dtype)


def critic_forward(x, w1, b1, w2, b2, *, block_m=512, compute_dtype=jnp.float32):
    """Forward pass of CriticNetwork: relu(x @ w1 + b1) @ w2 + b2.

    x:  (B, n_states) float32
    w1: (n_states, n_hidden)   (== torch linear_input_.weight.T)
    b1: (1, n_hidden) or (n_hidden,)
    w2: (n_hidden, 1)          (== torch linear_value_.weight.T)
    b2: (1, 1), (1,) or scalar
    Returns (B, 1) float32.

    On v6e/v7x, pass compute_dtype=jnp.bfloat16 for the MXU inputs (accumulation
    stays fp32 via preferred_element_type); keep fp32 on v5e.
    """
    B, S = x.shape
    H = w1.shape[1]

    w1 = jnp.asarray(w1, jnp.float32)
    b1 = jnp.asarray(b1, jnp.float32).reshape(1, H)
    w2_row = jnp.asarray(w2, jnp.float32).reshape(1, H)   # value head as a lane row
    b2_s = jnp.asarray(b2, jnp.float32).reshape(1)

    # Zero-pad hidden dim to a full 128-lane vreg width.  Exact: padded columns
    # of W1 and b1 are 0 -> ReLU(0)=0, and padded w2 entries are 0 -> contribute 0.
    Hp = _round_up(H, 128)
    if Hp != H:
        w1 = jnp.pad(w1, ((0, 0), (0, Hp - H)))
        b1 = jnp.pad(b1, ((0, 0), (0, Hp - H)))
        w2_row = jnp.pad(w2_row, ((0, 0), (0, Hp - H)))

    # Batch tile: multiple of 128 (MXU / lane friendly).  Weights stay resident
    # in VMEM across tiles; only the x tile / output tile stream.
    tm = _round_up(min(block_m, _round_up(B, 128)), 128)
    Bp = _round_up(B, tm)
    if Bp != B:
        x = jnp.pad(x, ((0, Bp - B), (0, 0)))

    x = x.astype(compute_dtype)
    w1 = w1.astype(compute_dtype)

    grid = (Bp // tm,)
    out = pl.pallas_call(
        critic_kernel,
        out_shape=jax.ShapeDtypeStruct((1, Bp), jnp.float32),
        grid_spec=pltpu.PrefetchScalarGridSpec(
            num_scalar_prefetch=0,
            grid=grid,
            in_specs=[
                pl.BlockSpec((tm, S), lambda i: (i, 0)),    # x: streamed per tile
                pl.BlockSpec((S, Hp), lambda i: (0, 0)),    # W1: VMEM resident
                pl.BlockSpec((1, Hp), lambda i: (0, 0)),    # b1: VMEM resident
                pl.BlockSpec((1, Hp), lambda i: (0, 0)),    # w2 row: VMEM resident
                pl.BlockSpec(memory_space=pltpu.MemorySpace.SMEM),  # b2 scalar
            ],
            out_specs=pl.BlockSpec((1, tm), lambda i: (0, i)),  # lane-dense output
        ),
        compiler_params=pltpu.CompilerParams(
            # Batch tiles are independent -> shard across v7x's two TensorCores.
            dimension_semantics=("parallel",),
        ),
    )(x, w1, b1, w2_row, b2_s)

    # Layout plumbing back to the module's (B, 1) contract.
    return out[0, :B, None]


def init_params(key, n_states, n_hidden):
    """Deterministic init mirroring torch.nn.Linear default:
       U(-1/sqrt(fan_in), 1/sqrt(fan_in)) for both weight and bias."""
    k1, k2, k3, k4 = jax.random.split(key, 4)
    bound1 = 1.0 / jnp.sqrt(jnp.float32(n_states))
    bound2 = 1.0 / jnp.sqrt(jnp.float32(n_hidden))
    # Stored as (in, out) -> equivalent to torch weight.T
    w1 = jax.random.uniform(k1, (n_states, n_hidden), jnp.float32, -bound1, bound1)
    b1 = jax.random.uniform(k2, (1, n_hidden), jnp.float32, -bound1, bound1)
    w2 = jax.random.uniform(k3, (n_hidden, 1), jnp.float32, -bound2, bound2)
    b2 = jax.random.uniform(k4, (1, 1), jnp.float32, -bound2, bound2)
    return w1, b1, w2, b2


if __name__ == "__main__":
    n_states, n_hidden, batch = 8, 32, 8

    key = jax.random.PRNGKey(0)
    kx, kp = jax.random.split(key)
    x = jax.random.normal(kx, (batch, n_states), jnp.float32)
    w1, b1, w2, b2 = init_params(kp, n_states, n_hidden)

    value = critic_forward(x, w1, b1, w2, b2)
    value = jax.block_until_ready(value)

    # Reference check in plain JAX (same math as the PyTorch module)
    ref = jnp.maximum(x @ w1 + b1, 0.0) @ w2 + b2
    assert value.shape == (batch, 1)
    assert jnp.allclose(value, ref, atol=1e-5, rtol=1e-5)

    print("KERNEL_OK")
</pallas_src>

<mosaic_0001>
module attributes {stable_mosaic.version = 11 : i64} {
  func.func @critic_kernel(%arg0: i32, %arg1: memref<128x8xf32, #tpu.memory_space<vmem>>, %arg2: memref<8x128xf32, #tpu.memory_space<vmem>>, %arg3: memref<1x128xf32, #tpu.memory_space<vmem>>, %arg4: memref<1x128xf32, #tpu.memory_space<vmem>>, %arg5: memref<1xf32, #tpu.memory_space<smem>>, %arg6: memref<1x128xf32, #tpu.memory_space<vmem>>) attributes {dimension_semantics = [#tpu.dimension_semantics<parallel>], iteration_bounds = array<i64: 1>, scalar_prefetch = 0 : i64, scratch_operands = 0 : i64, tpu.core_type = #tpu.core_type<tc>, window_params = [{transform_indices = @transform_0, window_bounds = array<i64: 128, 8>}, {pipeline_mode = #tpu.pipeline_mode<synchronous>, transform_indices = @transform_1, window_bounds = array<i64: 8, 128>}, {pipeline_mode = #tpu.pipeline_mode<synchronous>, transform_indices = @transform_2, window_bounds = array<i64: 1, 128>}, {pipeline_mode = #tpu.pipeline_mode<synchronous>, transform_indices = @transform_3, window_bounds = array<i64: 1, 128>}, {transform_indices = @transform_4, window_bounds = array<i64: 1>}, {transform_indices = @transform_5, window_bounds = array<i64: 1, 128>}]} {
    %c0 = arith.constant 0 : index
    %c0_0 = arith.constant 0 : index
    %0 = vector.load %arg1[%c0, %c0_0] : memref<128x8xf32, #tpu.memory_space<vmem>>, vector<128x8xf32>
    %c0_1 = arith.constant 0 : index
    %c0_2 = arith.constant 0 : index
    %1 = vector.load %arg2[%c0_1, %c0_2] : memref<8x128xf32, #tpu.memory_space<vmem>>, vector<8x128xf32>
    %cst = arith.constant dense<0.000000e+00> : vector<128x128xf32>
    %2 = tpu.matmul %0, %1, %cst {dimension_numbers = #tpu.dot_dimension_numbers<[1], [0], [0], [1], [0, 0, 1, 1], [], []>} : vector<128x8xf32>, vector<8x128xf32>, vector<128x128xf32> -> vector<128x128xf32>
    %c0_3 = arith.constant 0 : index
    %c0_4 = arith.constant 0 : index
    %3 = vector.load %arg3[%c0_3, %c0_4] : memref<1x128xf32, #tpu.memory_space<vmem>>, vector<1x128xf32>
    %4 = vector.broadcast %3 : vector<1x128xf32> to vector<128x128xf32>
    %5 = arith.addf %2, %4 : vector<128x128xf32>
    %cst_5 = arith.constant 0.000000e+00 : f32
    %6 = vector.broadcast %cst_5 : f32 to vector<128x128xf32>
    %7 = arith.maximumf %5, %6 : vector<128x128xf32>
    %c0_6 = arith.constant 0 : index
    %c0_7 = arith.constant 0 : index
    %8 = vector.load %arg4[%c0_6, %c0_7] : memref<1x128xf32, #tpu.memory_space<vmem>>, vector<1x128xf32>
    %9 = vector.broadcast %8 : vector<1x128xf32> to vector<128x128xf32>
    %10 = arith.mulf %7, %9 : vector<128x128xf32>
    %cst_8 = arith.constant dense<0.000000e+00> : vector<128xf32>
    %11 = vector.multi_reduction <add>, %10, %cst_8 [1] : vector<128x128xf32> to vector<128xf32>
    %c0_9 = arith.constant 0 : index
    %12 = memref.load %arg5[%c0_9] : memref<1xf32, #tpu.memory_space<smem>>
    %13 = vector.broadcast %12 : f32 to vector<128xf32>
    %14 = arith.addf %11, %13 : vector<128xf32>
    %15 = vector.shape_cast %14 : vector<128xf32> to vector<1x128xf32>
    %c0_10 = arith.constant 0 : index
    %c0_11 = arith.constant 0 : index
    %16 = vector.load %arg6[%c0_10, %c0_11] : memref<1x128xf32, #tpu.memory_space<vmem>>, vector<1x128xf32>
    tpu.vector_store %arg6[%c0_10, %c0_11], %15 {strides = array<i32>} : memref<1x128xf32, #tpu.memory_space<vmem>>, vector<1x128xf32>,
    return
  }
  func.func @transform_0(%arg0: i32) -> (i32, i32) {
    %c0_i32 = arith.constant 0 : i32
    %c0_i32_0 = arith.constant 0 : i32
    return %arg0, %c0_i32 : i32, i32
  }
  func.func @transform_1(%arg0: i32) -> (i32, i32) {
    %c0_i32 = arith.constant 0 : i32
    %c0_i32_0 = arith.constant 0 : i32
    %c0_i32_1 = arith.constant 0 : i32
    return %c0_i32, %c0_i32_0 : i32, i32
  }
  func.func @transform_2(%arg0: i32) -> (i32, i32) {
    %c0_i32 = arith.constant 0 : i32
    %c0_i32_0 = arith.constant 0 : i32
    %c0_i32_1 = arith.constant 0 : i32
    return %c0_i32, %c0_i32_0 : i32, i32
  }
  func.func @transform_3(%arg0: i32) -> (i32, i32) {
    %c0_i32 = arith.constant 0 : i32
    %c0_i32_0 = arith.constant 0 : i32
    %c0_i32_1 = arith.constant 0 : i32
    return %c0_i32, %c0_i32_0 : i32, i32
  }
  func.func @transform_4(%arg0: i32) -> i32 {
    %c0_i32 = arith.constant 0 : i32
    %c0_i32_0 = arith.constant 0 : i32
    return %c0_i32 : i32
  }
  func.func @transform_5(%arg0: i32) -> (i32, i32) {
    %c0_i32 = arith.constant 0 : i32
    %c0_i32_0 = arith.constant 0 : i32
    return %c0_i32, %arg0 : i32, i32
  }
}

</mosaic_0001>

<llo_original>
// kernel: tpu_custom_call.1
$region0: #{tpu_custom_call.1}
  #allocation0 [shape = 'u32[]', space=smem, size = 0x4, offset = 0x4, fixed_abs, tag = 'smem constant byte address 0x4 - core index']
  #allocation1 [shape = 'u32[144,128]{1,0:T(1,128)}', space=vmem, size = 0x12000, scoped, tag = 'internal scratch']
  #allocation2 [shape = 'f32[1]{0:T(128)S(6)}', space=smem, size = 0x200, scoped, tag = 'scoped memory for tpu_custom_call.1']
  %s0 = inlined_call_operand.vmem [shape: f32[128,8], index: 0, kind: input, shape index: {}]
  %s1 = inlined_call_operand.vmem [shape: f32[8,128], index: 1, kind: input, shape index: {}]
  %s2 = inlined_call_operand.vmem [shape: f32[1,128], index: 2, kind: input, shape index: {}]
  %s3 = inlined_call_operand.vmem [shape: f32[1,128], index: 3, kind: input, shape index: {}]
  %s4 = inlined_call_operand.<no memory space> [shape: f32[1], index: 4, kind: input, shape index: {}]
  %s5 = inlined_call_operand.hbm [shape: f32[1,128], index: 5, kind: output, shape index: {}]
  %s6 = sld [smem:[#allocation0]]
  $region30: #{tpu_custom_call.1} parent=0
    _
  %s8 = ssub.s32 1, %s6
  %s9 = scalar_select 0, %s8, %s6
  %10 = sst [smem:[#allocation2]] %s4
  $region1: #{tpu_custom_call.1} parent=0
    #allocation3 [shape = 'u8[512]{0}', space=vmem, size = 0x400, scoped, tag = 'output window, operand 0, single buffered']
    #allocation4 [shape = 's32[1]{0}', space=sflag, size = 0x4, scoped, tag = 'scoped memory for tpu_custom_call.1']
    %11 = vsyncpa [#allocation4], 0
    // Predicated region
    $region2: #{tpu_custom_call.1} parent=1 // pred_check
      _
    $region3: #{tpu_custom_call.1} parent=1 // pred_check_branch
      %13 = sbr.rel (0) target = $region5
    $region4: #{tpu_custom_call.1} parent=1 // pred_region
      _
    $region5: #{tpu_custom_call.1} parent=1 // pred_fallthru
      _
    // Predicated region
    $region6: #{tpu_custom_call.1} parent=1 // pred_check
      _
    $region7: #{tpu_custom_call.1} parent=1 // pred_check_branch
      %15 = sbr.rel (0) target = $region9
    $region8: #{tpu_custom_call.1} parent=1 // pred_region
      _
    $region9: #{tpu_custom_call.1} parent=1 // pred_fallthru
      _
    // Predicated region
    $region10: #{tpu_custom_call.1} parent=1 // pred_check
      _
    $region11: #{tpu_custom_call.1} parent=1 // pred_check_branch
      %17 = sbr.rel (0) target = $region13
    $region12: #{tpu_custom_call.1} parent=1 // pred_region
      _
    $region13: #{tpu_custom_call.1} parent=1 // pred_fallthru
      _
    // Predicated region
    $region14: #{tpu_custom_call.1} parent=1 // pred_check
      _
    $region15: #{tpu_custom_call.1} parent=1 // pred_check_branch
      %19 = sbr.rel (0) target = $region17
    $region16: #{tpu_custom_call.1} parent=1 // pred_region
      _
    $region17: #{tpu_custom_call.1} parent=1 // pred_fallthru
      _
    // Predicated region
    $region18: #{tpu_custom_call.1} parent=1 // pred_check
      _
    $region19: #{tpu_custom_call.1} parent=1 // pred_check_branch
      %21 = sbr.rel (0) target = $region21
    $region20: #{tpu_custom_call.1} parent=1 // pred_region
      _
    $region21: #{tpu_custom_call.1} parent=1 // pred_fallthru
      _
    %v22 = vld [vmem:[%s0] sm:$0xff]
    %v23 = vld [vmem:[%s0 + $0x8] sm:$0xff]
    %v24 = vld [vmem:[%s0 + $0x10] sm:$0xff]
    %v25 = vld [vmem:[%s0 + $0x18] sm:$0xff]
    %v26 = vld [vmem:[%s0 + $0x20] sm:$0xff]
    %v27 = vld [vmem:[%s0 + $0x28] sm:$0xff]
    %v28 = vld [vmem:[%s0 + $0x30] sm:$0xff]
    %v29 = vld [vmem:[%s0 + $0x38] sm:$0xff]
    %v30 = vld [vmem:[%s0 + $0x40] sm:$0xff]
    %v31 = vld [vmem:[%s0 + $0x48] sm:$0xff]
    %v32 = vld [vmem:[%s0 + $0x50] sm:$0xff]
    %v33 = vld [vmem:[%s0 + $0x58] sm:$0xff]
    %v34 = vld [vmem:[%s0 + $0x60] sm:$0xff]
    %v35 = vld [vmem:[%s0 + $0x68] sm:$0xff]
    %v36 = vld [vmem:[%s0 + $0x70] sm:$0xff]
    %v37 = vld [vmem:[%s0 + $0x78] sm:$0xff]
    %v38 = vld [vmem:[%s1] sm:$0xff]
    %v39 = vld [vmem:[%s2] sm:$0x1]
    %v41 = vlaneseq
    %v42 = vshrl.u32 %v41, 7
    %v43 = vsub.s32 0, %v42
    %v44 = vrot.slane %v39, %v43
    %vm46 = vcmask 64512
    %v48 = vsel %vm46, %v22, 0
    %v51 = vsel %vm46, %v23, 0
    %v54 = vsel %vm46, %v24, 0
    %v57 = vsel %vm46, %v25, 0
    %v60 = vsel %vm46, %v26, 0
    %v63 = vsel %vm46, %v27, 0
    %v66 = vsel %vm46, %v28, 0
    %v69 = vsel %vm46, %v29, 0
    %v72 = vsel %vm46, %v30, 0
    %v75 = vsel %vm46, %v31, 0
    %v78 = vsel %vm46, %v32, 0
    %v81 = vsel %vm46, %v33, 0
    %v84 = vsel %vm46, %v34, 0
    %v87 = vsel %vm46, %v35, 0
    %v90 = vsel %vm46, %v36, 0
    %v93 = vsel %vm46, %v37, 0
    %95 = vmatprep.subr.mxu0 0.0
    %96 = vmatpush1.msra.mxu0 0.0
    %97 = vmatprep.subr.mxu0 0.0
    %98 = vmatpush1.msra.mxu0 0.0
    %99 = vmatprep.subr.mxu0 0.0
    %100 = vmatpush1.msra.mxu0 0.0
    %101 = vmatprep.subr.mxu0 0.0
    %102 = vmatpush1.msra.mxu0 0.0
    %103 = vmatprep.subr.mxu0 0.0
    %104 = vmatpush1.msra.mxu0 0.0
    %105 = vmatprep.subr.mxu0 0.0
    %106 = vmatpush1.msra.mxu0 0.0
    %107 = vmatprep.subr.mxu0 0.0
    %108 = vmatpush1.msra.mxu0 0.0
    %109 = vmatprep.subr.mxu0 0.0
    %110 = vmatpush1.msra.mxu0 0.0
    %111 = vmatprep.subr.mxu0 0.0
    %112 = vmatpush1.msra.mxu0 0.0
    %113 = vmatprep.subr.mxu0 0.0
    %114 = vmatpush1.msra.mxu0 0.0
    %115 = vmatprep.subr.mxu0 0.0
    %116 = vmatpush1.msra.mxu0 0.0
    %117 = vmatprep.subr.mxu0 0.0
    %118 = vmatpush1.msra.mxu0 0.0
    %119 = vmatprep.subr.mxu0 0.0
    %120 = vmatpush1.msra.mxu0 0.0
    %121 = vmatprep.subr.mxu0 0.0
    %122 = vmatpush1.msra.mxu0 0.0
    %123 = vmatprep.subr.mxu0 0.0
    %124 = vmatpush1.msra.mxu0 0.0
    %125 = vmatprep.subr.mxu0 0.0
    %126 = vmatpush1.msra.mxu0 %v38
    %127 = vmatprep.subr.mxu0 0.0
    %128 = vmatpush2.msra.mxu0 0.0
    %129 = vmatprep.subr.mxu0 0.0
    %130 = vmatpush2.msra.mxu0 0.0
    %131 = vmatprep.subr.mxu0 0.0
    %132 = vmatpush2.msra.mxu0 0.0
    %133 = vmatprep.subr.mxu0 0.0
    %134 = vmatpush2.msra.mxu0 0.0
    %135 = vmatprep.subr.mxu0 0.0
    %136 = vmatpush2.msra.mxu0 0.0
    %137 = vmatprep.subr.mxu0 0.0
    %138 = vmatpush2.msra.mxu0 0.0
    %139 = vmatprep.subr.mxu0 0.0
    %140 = vmatpush2.msra.mxu0 0.0
    %141 = vmatprep.subr.mxu0 0.0
    %142 = vmatpush2.msra.mxu0 0.0
    %143 = vmatprep.subr.mxu0 0.0
    %144 = vmatpush2.msra.mxu0 0.0
    %145 = vmatprep.subr.mxu0 0.0
    %146 = vmatpush2.msra.mxu0 0.0
    %147 = vmatprep.subr.mxu0 0.0
    %148 = vmatpush2.msra.mxu0 0.0
    %149 = vmatprep.subr.mxu0 0.0
    %150 = vmatpush2.msra.mxu0 0.0
    %151 = vmatprep.subr.mxu0 0.0
    %152 = vmatpush2.msra.mxu0 0.0
    %153 = vmatprep.subr.mxu0 0.0
    %154 = vmatpush2.msra.mxu0 0.0
    %155 = vmatprep.subr.mxu0 0.0
    %156 = vmatpush2.msra.mxu0 0.0
    %157 = vmatprep.subr.mxu0 0.0
    %158 = vmatpush2.msra.mxu0 0.0
    %159 = vmatprep.mubr.f32.mxu0 0.0
    %160 = vmatmul.mubr.f32.gmra.mxu0 %v48
    %v161 = vpop.f32.mrf.mxu0
    %v162 = vadd.f32 %v44, %v161
    %v163 = vpop.f32.mrf.mxu0
    %164 = vmatprep.mubr.f32.mxu0 0.0
    %165 = vmatmul.mubr.f32.gmra.mxu0 %v51
    %v166 = vpop.f32.mrf.mxu0
    %v167 = vadd.f32 %v44, %v166
    %v168 = vpop.f32.mrf.mxu0
    %169 = vmatprep.mubr.f32.mxu0 0.0
    %170 = vmatmul.mubr.f32.gmra.mxu0 %v54
    %v171 = vpop.f32.mrf.mxu0
    %v172 = vadd.f32 %v44, %v171
    %v173 = vpop.f32.mrf.mxu0
    %174 = vmatprep.mubr.f32.mxu0 0.0
    %175 = vmatmul.mubr.f32.gmra.mxu0 %v57
    %v176 = vpop.f32.mrf.mxu0
    %v177 = vadd.f32 %v44, %v176
    %v178 = vpop.f32.mrf.mxu0
    %179 = vmatprep.mubr.f32.mxu0 0.0
    %180 = vmatmul.mubr.f32.gmra.mxu0 %v60
    %v181 = vpop.f32.mrf.mxu0
    %v182 = vadd.f32 %v44, %v181
    %v183 = vpop.f32.mrf.mxu0
    %184 = vmatprep.mubr.f32.mxu0 0.0
    %185 = vmatmul.mubr.f32.gmra.mxu0 %v63
    %v186 = vpop.f32.mrf.mxu0
    %v187 = vadd.f32 %v44, %v186
    %v188 = vpop.f32.mrf.mxu0
    %189 = vmatprep.mubr.f32.mxu0 0.0
    %190 = vmatmul.mubr.f32.gmra.mxu0 %v66
    %v191 = vpop.f32.mrf.mxu0
    %v192 = vadd.f32 %v44, %v191
    %v193 = vpop.f32.mrf.mxu0
    %194 = vmatprep.mubr.f32.mxu0 0.0
    %195 = vmatmul.mubr.f32.gmra.mxu0 %v69
    %v196 = vpop.f32.mrf.mxu0
    %v197 = vadd.f32 %v44, %v196
    %v198 = vpop.f32.mrf.mxu0
    %199 = vmatprep.mubr.f32.mxu0 0.0
    %200 = vmatmul.mubr.f32.gmra.mxu0 %v72
    %v201 = vpop.f32.mrf.mxu0
    %v202 = vadd.f32 %v44, %v201
    %v203 = vpop.f32.mrf.mxu0
    %204 = vmatprep.mubr.f32.mxu0 0.0
    %205 = vmatmul.mubr.f32.gmra.mxu0 %v75
    %v206 = vpop.f32.mrf.mxu0
    %v207 = vadd.f32 %v44, %v206
    %v208 = vpop.f32.mrf.mxu0
    %209 = vmatprep.mubr.f32.mxu0 0.0
    %210 = vmatmul.mubr.f32.gmra.mxu0 %v78
    %v211 = vpop.f32.mrf.mxu0
    %v212 = vadd.f32 %v44, %v211
    %v213 = vpop.f32.mrf.mxu0
    %214 = vmatprep.mubr.f32.mxu0 0.0
    %215 = vmatmul.mubr.f32.gmra.mxu0 %v81
    %v216 = vpop.f32.mrf.mxu0
    %v217 = vadd.f32 %v44, %v216
    %v218 = vpop.f32.mrf.mxu0
    %219 = vmatprep.mubr.f32.mxu0 0.0
    %220 = vmatmul.mubr.f32.gmra.mxu0 %v84
    %v221 = vpop.f32.mrf.mxu0
    %v222 = vadd.f32 %v44, %v221
    %v223 = vpop.f32.mrf.mxu0
    %224 = vmatprep.mubr.f32.mxu0 0.0
    %225 = vmatmul.mubr.f32.gmra.mxu0 %v87
    %v226 = vpop.f32.mrf.mxu0
    %v227 = vadd.f32 %v44, %v226
    %v228 = vpop.f32.mrf.mxu0
    %229 = vmatprep.mubr.f32.mxu0 0.0
    %230 = vmatmul.mubr.f32.gmra.mxu0 %v90
    %v231 = vpop.f32.mrf.mxu0
    %v232 = vadd.f32 %v44, %v231
    %v233 = vpop.f32.mrf.mxu0
    %234 = vmatprep.mubr.f32.mxu0 0.0
    %235 = vmatmul.mubr.f32.gmra.mxu0 %v93
    %v236 = vpop.f32.mrf.mxu0
    %v237 = vadd.f32 %v44, %v236
    %v238 = vpop.f32.mrf.mxu0
    %239 = vdwg.mxu0
    %v240 = vmax.f32 %v162, 0.0
    %v241 = vmax.f32 %v167, 0.0
    %v242 = vmax.f32 %v172, 0.0
    %v243 = vmax.f32 %v177, 0.0
    %v244 = vmax.f32 %v182, 0.0
    %v245 = vmax.f32 %v187, 0.0
    %v246 = vmax.f32 %v192, 0.0
    %v247 = vmax.f32 %v197, 0.0
    %v248 = vmax.f32 %v202, 0.0
    %v249 = vmax.f32 %v207, 0.0
    %v250 = vmax.f32 %v212, 0.0
    %v251 = vmax.f32 %v217, 0.0
    %v252 = vmax.f32 %v222, 0.0
    %v253 = vmax.f32 %v227, 0.0
    %v254 = vmax.f32 %v232, 0.0
    %v255 = vmax.f32 %v237, 0.0
    %v256 = vld [vmem:[%s3] sm:$0x1]
    %v258 = vlaneseq
    %v259 = vshrl.u32 %v258, 7
    %v260 = vsub.s32 0, %v259
    %v261 = vrot.slane %v256, %v260
    %v263 = vmul.f32 %v240, %v261
    %v264 = vmul.f32 %v241, %v261
    %v265 = vmul.f32 %v242, %v261
    %v266 = vmul.f32 %v243, %v261
    %v267 = vmul.f32 %v244, %v261
    %v268 = vmul.f32 %v245, %v261
    %v269 = vmul.f32 %v246, %v261
    %v270 = vmul.f32 %v247, %v261
    %v271 = vmul.f32 %v248, %v261
    %v272 = vmul.f32 %v249, %v261
    %v273 = vmul.f32 %v250, %v261
    %v274 = vmul.f32 %v251, %v261
    %v275 = vmul.f32 %v252, %v261
    %v276 = vmul.f32 %v253, %v261
    %v277 = vmul.f32 %v254, %v261
    %v278 = vmul.f32 %v255, %v261
    %279 = vadd.xlane.f32.xlu0 %v263
    %v280 = vpop.xlane.xlu0 %279
    %281 = vadd.xlane.f32.xlu0 %v264
    %v282 = vpop.xlane.xlu0 %281
    %283 = vadd.xlane.f32.xlu0 %v265
    %v284 = vpop.xlane.xlu0 %283
    %285 = vadd.xlane.f32.xlu0 %v266
    %v286 = vpop.xlane.xlu0 %285
    %287 = vadd.xlane.f32.xlu0 %v267
    %v288 = vpop.xlane.xlu0 %287
    %289 = vadd.xlane.f32.xlu0 %v268
    %v290 = vpop.xlane.xlu0 %289
    %291 = vadd.xlane.f32.xlu0 %v269
    %v292 = vpop.xlane.xlu0 %291
    %293 = vadd.xlane.f32.xlu0 %v270
    %v294 = vpop.xlane.xlu0 %293
    %295 = vadd.xlane.f32.xlu0 %v271
    %v296 = vpop.xlane.xlu0 %295
    %297 = vadd.xlane.f32.xlu0 %v272
    %v298 = vpop.xlane.xlu0 %297
    %299 = vadd.xlane.f32.xlu0 %v273
    %v300 = vpop.xlane.xlu0 %299
    %301 = vadd.xlane.f32.xlu0 %v274
    %v302 = vpop.xlane.xlu0 %301
    %303 = vadd.xlane.f32.xlu0 %v275
    %v304 = vpop.xlane.xlu0 %303
    %305 = vadd.xlane.f32.xlu0 %v276
    %v306 = vpop.xlane.xlu0 %305
    %307 = vadd.xlane.f32.xlu0 %v277
    %v308 = vpop.xlane.xlu0 %307
    %309 = vadd.xlane.f32.xlu0 %v278
    %v310 = vpop.xlane.xlu0 %309
    %s311 = sld [smem:[#allocation2]]
    %v312 = vstv %s311
    %v313 = vadd.f32 %v280, %v312
    %v314 = vadd.f32 %v282, %v312
    %v315 = vadd.f32 %v284, %v312
    %v316 = vadd.f32 %v286, %v312
    %v317 = vadd.f32 %v288, %v312
    %v318 = vadd.f32 %v290, %v312
    %v319 = vadd.f32 %v292, %v312
    %v320 = vadd.f32 %v294, %v312
    %v321 = vadd.f32 %v296, %v312
    %v322 = vadd.f32 %v298, %v312
    %v323 = vadd.f32 %v300, %v312
    %v324 = vadd.f32 %v302, %v312
    %v325 = vadd.f32 %v304, %v312
    %v326 = vadd.f32 %v306, %v312
    %v327 = vadd.f32 %v308, %v312
    %v328 = vadd.f32 %v310, %v312
    %v345 = vlaneseq
    %v346 = vand.u32 %v345, 127
    %v347 = vlaneseq
    %v348 = vshrl.u32 %v347, 7
    %v349 = vsub.s32 %v346, %v348
    %v350 = vrot.slane %v313, %v349
    %v351 = vadd.s32 %v346, 4294967288
    %v352 = vlaneseq
    %v353 = vshrl.u32 %v352, 7
    %v354 = vsub.s32 %v351, %v353
    %v355 = vrot.slane %v314, %v354
    %vm356 = vcmask 130112
    %v357 = vsel %vm356, %v355, %v350
    %v358 = vadd.s32 %v346, 4294967280
    %v359 = vlaneseq
    %v360 = vshrl.u32 %v359, 7
    %v361 = vsub.s32 %v358, %v360
    %v362 = vrot.slane %v315, %v361
    %vm363 = vcmask 195712
    %v364 = vsel %vm363, %v362, %v357
    %v365 = vadd.s32 %v346, 4294967272
    %v366 = vlaneseq
    %v367 = vshrl.u32 %v366, 7
    %v368 = vsub.s32 %v365, %v367
    %v369 = vrot.slane %v316, %v368
    %vm370 = vcmask 261312
    %v371 = vsel %vm370, %v369, %v364
    %v372 = vadd.s32 %v346, 4294967264
    %v373 = vlaneseq
    %v374 = vshrl.u32 %v373, 7
    %v375 = vsub.s32 %v372, %v374
    %v376 = vrot.slane %v317, %v375
    %vm377 = vcmask 326912
    %v378 = vsel %vm377, %v376, %v371
    %v379 = vadd.s32 %v346, 4294967256
    %v380 = vlaneseq
    %v381 = vshrl.u32 %v380, 7
    %v382 = vsub.s32 %v379, %v381
    %v383 = vrot.slane %v318, %v382
    %vm384 = vcmask 392512
    %v385 = vsel %vm384, %v383, %v378
    %v386 = vadd.s32 %v346, 4294967248
    %v387 = vlaneseq
    %v388 = vshrl.u32 %v387, 7
    %v389 = vsub.s32 %v386, %v388
    %v390 = vrot.slane %v319, %v389
    %vm391 = vcmask 458112
    %v392 = vsel %vm391, %v390, %v385
    %v393 = vadd.s32 %v346, 4294967240
    %v394 = vlaneseq
    %v395 = vshrl.u32 %v394, 7
    %v396 = vsub.s32 %v393, %v395
    %v397 = vrot.slane %v320, %v396
    %vm398 = vcmask 523712
    %v399 = vsel %vm398, %v397, %v392
    %v400 = vadd.s32 %v346, 4294967232
    %v401 = vlaneseq
    %v402 = vshrl.u32 %v401, 7
    %v403 = vsub.s32 %v400, %v402
    %v404 = vrot.slane %v321, %v403
    %vm405 = vcmask 589312
    %v406 = vsel %vm405, %v404, %v399
    %v407 = vadd.s32 %v346, 4294967224
    %v408 = vlaneseq
    %v409 = vshrl.u32 %v408, 7
    %v410 = vsub.s32 %v407, %v409
    %v411 = vrot.slane %v322, %v410
    %vm412 = vcmask 654912
    %v413 = vsel %vm412, %v411, %v406
    %v414 = vadd.s32 %v346, 4294967216
    %v415 = vlaneseq
    %v416 = vshrl.u32 %v415, 7
    %v417 = vsub.s32 %v414, %v416
    %v418 = vrot.slane %v323, %v417
    %vm419 = vcmask 720512
    %v420 = vsel %vm419, %v418, %v413
    %v421 = vadd.s32 %v346, 4294967208
    %v422 = vlaneseq
    %v423 = vshrl.u32 %v422, 7
    %v424 = vsub.s32 %v421, %v423
    %v425 = vrot.slane %v324, %v424
    %vm426 = vcmask 786112
    %v427 = vsel %vm426, %v425, %v420
    %v428 = vadd.s32 %v346, 4294967200
    %v429 = vlaneseq
    %v430 = vshrl.u32 %v429, 7
    %v431 = vsub.s32 %v428, %v430
    %v432 = vrot.slane %v325, %v431
    %vm433 = vcmask 851712
    %v434 = vsel %vm433, %v432, %v427
    %v435 = vadd.s32 %v346, 4294967192
    %v436 = vlaneseq
    %v437 = vshrl.u32 %v436, 7
    %v438 = vsub.s32 %v435, %v437
    %v439 = vrot.slane %v326, %v438
    %vm440 = vcmask 917312
    %v441 = vsel %vm440, %v439, %v434
    %v442 = vadd.s32 %v346, 4294967184
    %v443 = vlaneseq
    %v444 = vshrl.u32 %v443, 7
    %v445 = vsub.s32 %v442, %v444
    %v446 = vrot.slane %v327, %v445
    %vm447 = vcmask 982912
    %v448 = vsel %vm447, %v446, %v441
    %v449 = vadd.s32 %v346, 4294967176
    %v450 = vlaneseq
    %v451 = vshrl.u32 %v450, 7
    %v452 = vsub.s32 %v449, %v451
    %v453 = vrot.slane %v328, %v452
    %vm454 = vcmask 1048512
    %v455 = vsel %vm454, %v453, %v448
    %457 = vst [vmem:[#allocation3] sm:$0x1] %v455
    // Predicated region
    $region22: #{tpu_custom_call.1} parent=1 // pred_check
      _
    $region23: #{tpu_custom_call.1} parent=1 // pred_check_branch
      %459 = sbr.rel (0) target = $region25
    $region24: #{tpu_custom_call.1} parent=1 // pred_region
      %s461 = ssub.s32 16, 16
      %462 = vsyncadd [#allocation4], %s461
      %s464 = sshll.u32 [#allocation3], 4
      %s465 = int_to_ptr.vmem [resolvable:$true] %s464
      %467 = dma.vmem_to_hbm [thread:$0]  %s465, 16, %s5, [#allocation4]
    $region25: #{tpu_custom_call.1} parent=1 // pred_fallthru
      _
    // Predicated region
    $region26: #{tpu_custom_call.1} parent=1 // pred_check
      _
    $region27: #{tpu_custom_call.1} parent=1 // pred_check_branch
      %469 = sbr.rel (0) target = $region29
    $region28: #{tpu_custom_call.1} parent=1 // pred_region
      %470 = dma.done [#allocation4], 16
    $region29: #{tpu_custom_call.1} parent=1 // pred_fallthru
      _
    %471 = vsyncpa [#allocation4], 1

</llo_original>
